<compile_context>
chip_gen: v7x
topology: tpu7x:2x2x1
jax: 0.10.0
libtpu: 0.0.40
codegen_flags: <defaults>
</compile_context>

<pallas_src>
import functools

import jax
import jax.numpy as jnp
from jax.experimental import pallas as pl
from jax.experimental.pallas import tpu as pltpu

EPS = 1e-5
_LANES = 128
_TILE_ROWS = 1024  # 128-lane rows per grid step (512 KiB f32 + 128 KiB int8)


def _dpl_nll_kernel(ys_ref, delta_ref, part_ref, *, rows_total, eps):
    """One lane-dense tile of the masked-NLL partial sum.

    ys_ref:    (tb, 128) f32/bf16 VMEM — flattened probabilities (lane-dense)
    delta_ref: (tb, 128) int8/int32 VMEM — (label - class_index) per element;
               == 0 exactly at each example's target class; padding is nonzero
    part_ref:  (8, 128)  f32 VMEM — partial sum at [0, 0], zeros elsewhere
    """
    tb, lanes = ys_ref.shape
    i = pl.program_id(0)

    # Rows of a remainder tile past the logical array are unspecified (Pallas
    # OOB padding) — gate them out of the mask instead of trusting their bits.
    row = jax.lax.broadcasted_iota(jnp.int32, (tb, lanes), 0)
    in_bounds = row < (rows_total - i * tb)

    hit = (delta_ref[...].astype(jnp.int32) == 0) & in_bounds

    # Single per-tile upcast; everything after is f32 (v5e-safe).
    ys = ys_ref[...].astype(jnp.float32)
    # Select, not multiply-by-mask: NaN/Inf from log of garbage lanes cannot
    # propagate through a select.
    nll = jnp.where(hit, -jnp.log(ys + eps), 0.0)
    total = jnp.sum(nll)  # cross-lane reduce lands on the otherwise-idle XLU

    r8 = jax.lax.broadcasted_iota(jnp.int32, (8, lanes), 0)
    l8 = jax.lax.broadcasted_iota(jnp.int32, (8, lanes), 1)
    part_ref[...] = jnp.where((r8 == 0) & (l8 == 0), total, 0.0)


def dpl_nll_loss(ys: jax.Array, labels: jax.Array) -> jax.Array:
    """Pallas-backed mean NLL on probabilities (the DPL base loss).

    loss = mean_i( -log( ys[i, labels[i]] + EPS ) )
    """
    B, C = ys.shape
    N = B * C

    # delta[b, c] = labels[b] - c : zero exactly at the target class.  int8
    # when it fits (B*C bytes of HBM traffic, not 4*B*C); clip first so an
    # out-of-range label can never wrap onto zero (it contributes 0, matching
    # the previous behavior).
    labels_i32 = labels.astype(jnp.int32)
    delta = labels_i32[:, None] - jnp.arange(C, dtype=jnp.int32)[None, :]
    if C <= 127:
        delta = jnp.clip(delta, -127, 127).astype(jnp.int8)

    ys_flat = ys.reshape(N)
    delta_flat = delta.reshape(N)

    # Lane-dense layout: fold the small class dim into 128-wide rows so VPU /
    # EUP / XLU work is fully lane-utilized instead of C/128 (3% at C=4).
    # Small inputs pad up to whole (8,128) vregs (tiny copy); large inputs pad
    # only to a 128 multiple (free when B*C % 128 == 0, the common case).
    granule = _LANES * 8 if N <= _TILE_ROWS * _LANES else _LANES
    pad = (-N) % granule
    if pad:
        ys_flat = jnp.pad(ys_flat, (0, pad), constant_values=1.0)
        delta_flat = jnp.pad(delta_flat, (0, pad), constant_values=1)  # no hit
    rows = (N + pad) // _LANES
    ys2d = ys_flat.reshape(rows, _LANES)
    delta2d = delta_flat.reshape(rows, _LANES)

    tb = min(_TILE_ROWS, rows)        # single-tile case: block == full array
    num_tiles = pl.cdiv(rows, tb)

    kernel = functools.partial(_dpl_nll_kernel, rows_total=rows, eps=EPS)
    partials = pl.pallas_call(
        kernel,
        grid=(num_tiles,),
        in_specs=[
            pl.BlockSpec((tb, _LANES), lambda i: (i, 0)),
            pl.BlockSpec((tb, _LANES), lambda i: (i, 0)),
        ],
        # Per-tile partials go to distinct, tiling-legal (8,128) blocks so the
        # batch axis stays "parallel" (v7x: both TensorCores); an SMEM scalar
        # accumulator would serialize the axis.  Finished with one jnp.sum.
        out_specs=pl.BlockSpec((8, _LANES), lambda i: (i, 0)),
        out_shape=jax.ShapeDtypeStruct((num_tiles * 8, _LANES), jnp.float32),
        compiler_params=pltpu.CompilerParams(
            dimension_semantics=("parallel",)),
        cost_estimate=pl.CostEstimate(
            flops=6 * rows * _LANES,
            transcendentals=rows * _LANES,
            bytes_accessed=rows * _LANES * (ys.dtype.itemsize
                                            + delta2d.dtype.itemsize)
            + num_tiles * 8 * _LANES * 4,
        ),
    )(ys2d, delta2d)

    return jnp.sum(partials) * (1.0 / B)


class XOR_DPL:
    """XOR DPL loss — mirrors the PyTorch wrapper semantics."""

    def __init__(self, loss=None, nr_classes: int = 4) -> None:
        # Default base loss: Pallas NLL on probabilities (the usual DPL loss).
        # TODO(synk): an arbitrary user-supplied `loss` callable has no single
        # Pallas equivalent; we provide the canonical DPL NLL base loss here.
        self.base_loss = loss if loss is not None else self._default_base_loss
        self.nr_classes = nr_classes

    def _default_base_loss(self, out_dict, args):
        loss = dpl_nll_loss(out_dict["YS"], out_dict["LABELS"])
        losses = {"y-loss": loss}
        return loss, losses

    def forward(self, out_dict, args):
        loss, losses = self.base_loss(out_dict, args)
        return (loss, losses)

    __call__ = forward


if __name__ == "__main__":
    key = jax.random.PRNGKey(0)
    k_ys, k_lab = jax.random.split(key)

    B, C = 8, 4  # batch=8, nr_classes=4
    # DPL outputs are probabilities -> softmax of random logits (deterministic).
    logits = jax.random.normal(k_ys, (B, C), dtype=jnp.float32)
    ys = jax.nn.softmax(logits, axis=-1)
    labels = jax.random.randint(k_lab, (B,), 0, C, dtype=jnp.int32)

    out_dict = {"YS": ys, "LABELS": labels}
    args = None

    module = XOR_DPL(nr_classes=C)
    loss, losses = module(out_dict, args)
    loss = jax.block_until_ready(loss)

    # Reference check in plain JAX.
    ref = jnp.mean(-jnp.log(ys[jnp.arange(B), labels] + EPS))
    assert jnp.allclose(loss, ref, atol=1e-5, rtol=1e-5), (loss, ref)

    print("KERNEL_OK")
</pallas_src>

<mosaic_0001>
module attributes {stable_mosaic.version = 11 : i64} {
  func.func @_dpl_nll_kernel(%arg0: i32, %arg1: memref<8x128xf32, #tpu.memory_space<vmem>>, %arg2: memref<8x128xi8, #tpu.memory_space<vmem>>, %arg3: memref<8x128xf32, #tpu.memory_space<vmem>>) attributes {dimension_semantics = [#tpu.dimension_semantics<parallel>], iteration_bounds = array<i64: 1>, scalar_prefetch = 0 : i64, scratch_operands = 0 : i64, tpu.core_type = #tpu.core_type<tc>, window_params = [{transform_indices = @transform_0, window_bounds = array<i64: 8, 128>}, {transform_indices = @transform_1, window_bounds = array<i64: 8, 128>}, {transform_indices = @transform_2, window_bounds = array<i64: 8, 128>}]} {
    %0 = tpu.iota {dimensions = array<i32: 0>} : vector<8x128xi32>
    %c8_i32 = arith.constant 8 : i32
    %1 = arith.muli %arg0, %c8_i32 : i32
    %c8_i32_0 = arith.constant 8 : i32
    %2 = arith.subi %c8_i32_0, %1 : i32
    %3 = vector.broadcast %2 : i32 to vector<8x128xi32>
    %4 = arith.cmpi slt, %0, %3 : vector<8x128xi32>
    %c0 = arith.constant 0 : index
    %c0_1 = arith.constant 0 : index
    %5 = vector.load %arg2[%c0, %c0_1] : memref<8x128xi8, #tpu.memory_space<vmem>>, vector<8x128xi8>
    %6 = arith.extsi %5 : vector<8x128xi8> to vector<8x128xi32>
    %c0_i32 = arith.constant 0 : i32
    %7 = vector.broadcast %c0_i32 : i32 to vector<8x128xi32>
    %8 = arith.cmpi eq, %6, %7 : vector<8x128xi32>
    %9 = arith.andi %8, %4 : vector<8x128xi1>
    %c0_2 = arith.constant 0 : index
    %c0_3 = arith.constant 0 : index
    %10 = vector.load %arg1[%c0_2, %c0_3] : memref<8x128xf32, #tpu.memory_space<vmem>>, vector<8x128xf32>
    %cst = arith.constant 9.99999974E-6 : f32
    %11 = vector.broadcast %cst : f32 to vector<8x128xf32>
    %12 = arith.addf %10, %11 : vector<8x128xf32>
    %13 = math.log %12 : vector<8x128xf32>
    %cst_4 = arith.constant 0.000000e+00 : f32
    %14 = vector.broadcast %cst_4 : f32 to vector<8x128xf32>
    %15 = arith.subf %14, %13 : vector<8x128xf32>
    %cst_5 = arith.constant 0.000000e+00 : f32
    %16 = vector.broadcast %cst_5 : f32 to vector<8x128xf32>
    %17 = arith.select %9, %15, %16 : vector<8x128xi1>, vector<8x128xf32>
    %18 = vector.shape_cast %17 : vector<8x128xf32> to vector<1x8x128xf32>
    %cst_6 = arith.constant dense<0.000000e+00> : vector<1xf32>
    %19 = vector.multi_reduction <add>, %18, %cst_6 [1, 2] : vector<1x8x128xf32> to vector<1xf32>
    %20 = vector.shape_cast %19 : vector<1xf32> to vector<1x1x1xf32>
    %21 = vector.extract %20[0, 0, 0] : f32 from vector<1x1x1xf32>
    %22 = tpu.iota {dimensions = array<i32: 0>} : vector<8x128xi32>
    %23 = tpu.iota {dimensions = array<i32: 1>} : vector<8x128xi32>
    %c0_i32_7 = arith.constant 0 : i32
    %24 = vector.broadcast %c0_i32_7 : i32 to vector<8x128xi32>
    %25 = arith.cmpi eq, %22, %24 : vector<8x128xi32>
    %c0_i32_8 = arith.constant 0 : i32
    %26 = vector.broadcast %c0_i32_8 : i32 to vector<8x128xi32>
    %27 = arith.cmpi eq, %23, %26 : vector<8x128xi32>
    %28 = arith.andi %25, %27 : vector<8x128xi1>
    %cst_9 = arith.constant 0.000000e+00 : f32
    %29 = vector.broadcast %21 : f32 to vector<8x128xf32>
    %30 = vector.broadcast %cst_9 : f32 to vector<8x128xf32>
    %31 = arith.select %28, %29, %30 : vector<8x128xi1>, vector<8x128xf32>
    %c0_10 = arith.constant 0 : index
    %c0_11 = arith.constant 0 : index
    %32 = vector.load %arg3[%c0_10, %c0_11] : memref<8x128xf32, #tpu.memory_space<vmem>>, vector<8x128xf32>
    tpu.vector_store %arg3[%c0_10, %c0_11], %31 {strides = array<i32>} : memref<8x128xf32, #tpu.memory_space<vmem>>, vector<8x128xf32>,
    return
  }
  func.func @transform_0(%arg0: i32) -> (i32, i32) {
    %c0_i32 = arith.constant 0 : i32
    %c0_i32_0 = arith.constant 0 : i32
    return %arg0, %c0_i32 : i32, i32
  }
  func.func @transform_1(%arg0: i32) -> (i32, i32) {
    %c0_i32 = arith.constant 0 : i32
    %c0_i32_0 = arith.constant 0 : i32
    return %arg0, %c0_i32 : i32, i32
  }
  func.func @transform_2(%arg0: i32) -> (i32, i32) {
    %c0_i32 = arith.constant 0 : i32
    %c0_i32_0 = arith.constant 0 : i32
    return %arg0, %c0_i32 : i32, i32
  }
}

</mosaic_0001>

<llo_original>
// kernel: tpu_custom_call.1
$region0: #{tpu_custom_call.1}
  #allocation0 [shape = 'u32[]', space=smem, size = 0x4, offset = 0x4, fixed_abs, tag = 'smem constant byte address 0x4 - core index']
  #allocation1 [shape = 'u32[144,128]{1,0:T(1,128)}', space=vmem, size = 0x12000, scoped, tag = 'internal scratch']
  %s0 = inlined_call_operand.hbm [shape: f32[8,128], index: 0, kind: input, shape index: {}]
  %s1 = inlined_call_operand.vmem [shape: s8[8,128], index: 1, kind: input, shape index: {}]
  %s2 = inlined_call_operand.hbm [shape: f32[8,128], index: 2, kind: output, shape index: {}]
  %s3 = sld [smem:[#allocation0]]
  $region22: #{tpu_custom_call.1} parent=0
    _
  %s5 = ssub.s32 1, %s3
  %s6 = scalar_select 0, %s5, %s3
  $region1: #{tpu_custom_call.1} parent=0
    #allocation2 [shape = 'u8[4096]{0}', space=vmem, size = 0x1000, scoped, tag = 'input window, operand 0, single buffered']
    #allocation3 [shape = 's32[1]{0}', space=sflag, size = 0x4, scoped, tag = 'scoped memory for tpu_custom_call.1']
    #allocation4 [shape = 's32[1]{0}', space=sflag, size = 0x4, scoped, tag = 'scoped memory for tpu_custom_call.1']
    #allocation5 [shape = 'u8[4096]{0}', space=vmem, size = 0x1000, scoped, tag = 'output window, operand 0, single buffered']
    %7 = vsyncpa [#allocation3], 0
    %8 = vsyncpa [#allocation4], 0
    // Predicated region
    $region2: #{tpu_custom_call.1} parent=1 // pred_check
      _
    $region3: #{tpu_custom_call.1} parent=1 // pred_check_branch
      %10 = sbr.rel (0) target = $region5
    $region4: #{tpu_custom_call.1} parent=1 // pred_region
      %s12 = ssub.s32 128, 128
      %13 = vsyncadd [#allocation3], %s12
      %s15 = sshll.u32 [#allocation2], 4
      %s16 = int_to_ptr.vmem [resolvable:$true] %s15
      %18 = dma.hbm_to_vmem [thread:$0]  %s0, 128, %s16, [#allocation3]
    $region5: #{tpu_custom_call.1} parent=1 // pred_fallthru
      _
    // Predicated region
    $region6: #{tpu_custom_call.1} parent=1 // pred_check
      _
    $region7: #{tpu_custom_call.1} parent=1 // pred_check_branch
      %20 = sbr.rel (0) target = $region9
    $region8: #{tpu_custom_call.1} parent=1 // pred_region
      _
    $region9: #{tpu_custom_call.1} parent=1 // pred_fallthru
      _
    // Predicated region
    $region10: #{tpu_custom_call.1} parent=1 // pred_check
      _
    $region11: #{tpu_custom_call.1} parent=1 // pred_check_branch
      %22 = sbr.rel (0) target = $region13
    $region12: #{tpu_custom_call.1} parent=1 // pred_region
      %23 = dma.done [#allocation3], 128
    $region13: #{tpu_custom_call.1} parent=1 // pred_fallthru
      _
    %v24 = vlaneseq
    %v25 = vshrl.u32 %v24, 7
    %s26 = smul.u32 0, 8
    %s27 = ssub.s32 8, %s26
    %v28 = vstv %s27
    %vm29 = vcmp.lt.s32.totalorder %v25, %v28
    %v30 = vld [vmem:[%s1] sm:$0x3]
    %v31 = vunpack.c.0.s8 %v30
    %vm32 = vcmp.eq.s32.totalorder %v31, 0
    %vm33 = vmand %vm32, %vm29
    %v34 = vld [vmem:[#allocation2] sm:$0xff]
    %v35 = vadd.f32 %v34, 1e-05
    %v36 = vlog2.pop %v35
    %v37 = vmul.f32 %v36, 0.6931472
    %v38 = vsub.f32 0.0, %v37
    %v39 = vsel %vm33, %v38, 0.0
    %40 = vadd.xlane.f32.xlu0 %v39
    %v41 = vpop.xlane.xlu0 %40
    %v42 = vrot.slane %v41, 4
    %v43 = vadd.f32 %v41, %v42
    %v44 = vrot.slane %v43, 2
    %v45 = vadd.f32 %v43, %v44
    %v46 = vrot.slane %v45, 1
    %v47 = vadd.f32 %v45, %v46
    %s48 = vtos %v47
    %v49 = vlaneseq
    %v50 = vand.u32 %v49, 127
    %vm51 = vcmp.eq.s32.totalorder %v25, 0
    %vm52 = vcmp.eq.s32.totalorder %v50, 0
    %vm53 = vmand %vm51, %vm52
    %v54 = vstv %s48
    %v55 = vsel %vm53, %v54, 0.0
    %56 = vst [vmem:[#allocation5] sm:$0xff] %v55
    // Predicated region
    $region14: #{tpu_custom_call.1} parent=1 // pred_check
      _
    $region15: #{tpu_custom_call.1} parent=1 // pred_check_branch
      %58 = sbr.rel (0) target = $region17
    $region16: #{tpu_custom_call.1} parent=1 // pred_region
      %s60 = ssub.s32 128, 128
      %61 = vsyncadd [#allocation4], %s60
      %s63 = sshll.u32 [#allocation5], 4
      %s64 = int_to_ptr.vmem [resolvable:$true] %s63
      %66 = dma.vmem_to_hbm [thread:$0]  %s64, 128, %s2, [#allocation4]
    $region17: #{tpu_custom_call.1} parent=1 // pred_fallthru
      _
    // Predicated region
    $region18: #{tpu_custom_call.1} parent=1 // pred_check
      _
    $region19: #{tpu_custom_call.1} parent=1 // pred_check_branch
      %68 = sbr.rel (0) target = $region21
    $region20: #{tpu_custom_call.1} parent=1 // pred_region
      %69 = dma.done [#allocation4], 128
    $region21: #{tpu_custom_call.1} parent=1 // pred_fallthru
      _
    %70 = vsyncpa [#allocation3], 1
    %71 = vsyncpa [#allocation4], 1

</llo_original>
